<compile_context>
chip_gen: v7x
topology: tpu7x:2x2x1
jax: 0.10.0
libtpu: 0.0.40
codegen_flags: <defaults>
</compile_context>

<pallas_src>
import jax
import jax.numpy as jnp
from jax.experimental import pallas as pl
from jax.experimental.pallas import tpu as pltpu


def _translator_light_kernel(consts_ref, x_ref, wt_ref, bt_ref, out_ref):
    # Transposed fused Linear: (cout, cin) x (tb, cin) -> (cout, tb),
    # batch on the lane axis.  Same dimension_numbers pattern as q @ k^T.
    y_t = jax.lax.dot_general(
        wt_ref[...], x_ref[...],
        dimension_numbers=(((1,), (1,)), ((), ())),
        preferred_element_type=jnp.float32)                       # (cout, tb)
    y_t = jnp.tanh(y_t + bt_ref[...])                             # bias (cout, 1) bcast over lanes

    amb_scale = consts_ref[0]
    amb_off = consts_ref[1]
    diff_scale = consts_ref[2]
    diff_off = consts_ref[3]

    # (1+x)/2*max + (1-x)/2*min  ==  x*(max-min)/2 + (max+min)/2  (one FMA each)
    a_row = y_t[0:1, :] * amb_scale + amb_off                     # (1, tb)
    b_row = y_t[1:2, :] * diff_scale + diff_off                   # (1, tb)
    dxy = y_t[2:, :]                                              # (cout-2, tb)

    # normalize(cat([dxy, 1])) == [dxy * inv_norm, inv_norm]; sublane reduce is
    # just (cout-2) VPU adds of full-lane rows.
    inv_norm = jax.lax.rsqrt(jnp.sum(dxy * dxy, axis=0, keepdims=True) + 1.0)  # (1, tb)

    # Sublane stack (cheap) -> (C, tb) = [a | b | dxy*inv_norm | inv_norm] rows.
    res_t = jnp.concatenate([a_row, b_row, dxy * inv_norm, inv_norm], axis=0)

    # repeat(2, 1): store the same vregs into both halves; lane-dense unmasked vst.
    out_ref[0] = res_t
    out_ref[1] = res_t


def _batch_tile(B):
    if B <= 1024:
        return B                        # single tile; block dims == full array dims
    half = -(-B // 2)                   # cdiv(B, 2): >= 2 grid steps for v7x's 2 TCs
    half = -(-half // 128) * 128        # lane-aligned (multiple of 128)
    return min(8192, half)              # per-step x tile <= 1 MiB f32


def translator_nn_light(x, w1, b1, w2, b2,
                        min_amb=0.0, max_amb=1.0, min_diff=0.0, max_diff=1.0):
    B, cin = x.shape
    cout = w2.shape[1]
    assert cout >= 3, "Translator_NN_light assumes cout >= 3 (a, b, >=1 dir comp)"

    # Fold the two Linears (exact: no activation between them), then transpose
    # the tiny fused params so the kernel's matmul emits (cout, tb) directly.
    w = jnp.dot(w1, w2, preferred_element_type=jnp.float32)            # (cin, cout)
    bias = jnp.dot(b1, w2, preferred_element_type=jnp.float32) + b2    # (1, cout)
    w_t = jnp.transpose(w)                                             # (cout, cin)
    bias_t = jnp.transpose(bias)                                       # (cout, 1)
    # TODO(synk): if upstream delivers x in bfloat16, keep it bf16 here (cast
    # only w_t/bias_t to bf16; accumulation stays f32 via preferred_element_type)
    # for the remaining ~1.7x HBM-roofline win on v6e/v7x. Do NOT add a
    # wrapper-side f32->bf16 cast of x (extra full HBM pass).

    consts = jnp.array(
        [(max_amb - min_amb) * 0.5, (max_amb + min_amb) * 0.5,
         (max_diff - min_diff) * 0.5, (max_diff + min_diff) * 0.5],
        dtype=jnp.float32)

    C = cout + 1                        # rows: [a | b | d (cout-1 rows)]
    tb = _batch_tile(B)
    grid = (pl.cdiv(B, tb),)

    out = pl.pallas_call(
        _translator_light_kernel,
        out_shape=jax.ShapeDtypeStruct((2, C, B), jnp.float32),
        grid=grid,
        in_specs=[
            pl.BlockSpec(memory_space=pltpu.MemorySpace.SMEM),    # consts (4,)
            pl.BlockSpec((tb, cin), lambda i: (i, 0)),            # x tile (not transposed in HBM)
            pl.BlockSpec((cout, cin), lambda i: (0, 0)),          # fused W^T (pinned)
            pl.BlockSpec((cout, 1), lambda i: (0, 0)),            # fused bias^T (pinned)
        ],
        out_specs=pl.BlockSpec((2, C, tb), lambda i: (0, 0, i)),  # lane-dense slab
        compiler_params=pltpu.CompilerParams(
            dimension_semantics=("parallel",),
            vmem_limit_bytes=32 * 1024 * 1024),
    )(consts, x, w_t, bias_t)

    # Slice rows of the (2, C, B) slab back into the module's three outputs.
    canon_light_a = out[:, 0, :].reshape(2 * B, 1)
    canon_light_b = out[:, 1, :].reshape(2 * B, 1)
    canon_light_d = jnp.transpose(out[:, 2:, :], (0, 2, 1)).reshape(2 * B, cout - 1)
    return canon_light_a, canon_light_b, canon_light_d


def _reference(x, w1, b1, w2, b2, min_amb, max_amb, min_diff, max_diff):
    # Pure-JAX reference mirroring the PyTorch forward (unfused Linears).
    B = x.shape[0]
    y = jnp.tanh((x @ w1 + b1) @ w2 + b2)
    y = jnp.concatenate([y, y], axis=0)
    a = (1 + y[:, :1]) / 2 * max_amb + (1 - y[:, :1]) / 2 * min_amb
    b = (1 + y[:, 1:2]) / 2 * max_diff + (1 - y[:, 1:2]) / 2 * min_diff
    d = jnp.concatenate([y[:, 2:], jnp.ones((2 * B, 1), y.dtype)], axis=1)
    d = d / jnp.sqrt(jnp.sum(d ** 2, axis=1, keepdims=True))
    return a, b, d


if __name__ == "__main__":
    # Small shapes consistent with the module: cin=32 latent, nf=64, cout=4
    B, CIN, NF, COUT = 2, 32, 64, 4
    MIN_AMB, MAX_AMB, MIN_DIFF, MAX_DIFF = 0.0, 1.0, 0.0, 1.0   # cfgs defaults

    key = jax.random.PRNGKey(0)
    kx, kw1, kw2 = jax.random.split(key, 3)

    x = jax.random.normal(kx, (B, CIN), dtype=jnp.float32)
    # nn.init.normal_(weight, 0.0, 0.01); bias = 0.  Stored transposed (in, out).
    w1 = 0.01 * jax.random.normal(kw1, (CIN, NF), dtype=jnp.float32)
    b1 = jnp.zeros((1, NF), dtype=jnp.float32)
    w2 = 0.01 * jax.random.normal(kw2, (NF, COUT), dtype=jnp.float32)
    b2 = jnp.zeros((1, COUT), dtype=jnp.float32)

    out_a, out_b, out_d = translator_nn_light(
        x, w1, b1, w2, b2, MIN_AMB, MAX_AMB, MIN_DIFF, MAX_DIFF)
    jax.block_until_ready((out_a, out_b, out_d))

    ref_a, ref_b, ref_d = _reference(
        x, w1, b1, w2, b2, MIN_AMB, MAX_AMB, MIN_DIFF, MAX_DIFF)
    assert out_a.shape == (2 * B, 1) and out_b.shape == (2 * B, 1)
    assert out_d.shape == (2 * B, COUT - 1)
    assert jnp.allclose(out_a, ref_a, atol=1e-5)
    assert jnp.allclose(out_b, ref_b, atol=1e-5)
    assert jnp.allclose(out_d, ref_d, atol=1e-5)

    print("KERNEL_OK")
</pallas_src>

<mosaic_0001>
module attributes {stable_mosaic.version = 11 : i64} {
  func.func @_translator_light_kernel(%arg0: i32, %arg1: memref<4xf32, #tpu.memory_space<smem>>, %arg2: memref<2x32xf32, #tpu.memory_space<vmem>>, %arg3: memref<4x32xf32, #tpu.memory_space<vmem>>, %arg4: memref<4x1xf32, #tpu.memory_space<vmem>>, %arg5: memref<2x5x2xf32, #tpu.memory_space<vmem>>) attributes {dimension_semantics = [#tpu.dimension_semantics<parallel>], iteration_bounds = array<i64: 1>, scalar_prefetch = 0 : i64, scratch_operands = 0 : i64, tpu.core_type = #tpu.core_type<tc>, window_params = [{transform_indices = @transform_0, window_bounds = array<i64: 4>}, {transform_indices = @transform_1, window_bounds = array<i64: 2, 32>}, {pipeline_mode = #tpu.pipeline_mode<synchronous>, transform_indices = @transform_2, window_bounds = array<i64: 4, 32>}, {pipeline_mode = #tpu.pipeline_mode<synchronous>, transform_indices = @transform_3, window_bounds = array<i64: 4, 1>}, {transform_indices = @transform_4, window_bounds = array<i64: 2, 5, 2>}]} {
    %c0 = arith.constant 0 : index
    %c0_0 = arith.constant 0 : index
    %0 = vector.load %arg3[%c0, %c0_0] : memref<4x32xf32, #tpu.memory_space<vmem>>, vector<4x32xf32>
    %c0_1 = arith.constant 0 : index
    %c0_2 = arith.constant 0 : index
    %1 = vector.load %arg2[%c0_1, %c0_2] : memref<2x32xf32, #tpu.memory_space<vmem>>, vector<2x32xf32>
    %cst = arith.constant dense<0.000000e+00> : vector<4x2xf32>
    %2 = tpu.matmul %0, %1, %cst {dimension_numbers = #tpu.dot_dimension_numbers<[1], [1], [0], [0], [0, 0, 1, 0], [], []>} : vector<4x32xf32>, vector<2x32xf32>, vector<4x2xf32> -> vector<4x2xf32>
    %c0_3 = arith.constant 0 : index
    %c0_4 = arith.constant 0 : index
    %3 = vector.load %arg4[%c0_3, %c0_4] : memref<4x1xf32, #tpu.memory_space<vmem>>, vector<4x1xf32>
    %4 = vector.broadcast %3 : vector<4x1xf32> to vector<4x2xf32>
    %5 = arith.addf %2, %4 : vector<4x2xf32>
    %6 = math.tanh %5 : vector<4x2xf32>
    %c0_5 = arith.constant 0 : index
    %7 = memref.load %arg1[%c0_5] : memref<4xf32, #tpu.memory_space<smem>>
    %c1 = arith.constant 1 : index
    %8 = memref.load %arg1[%c1] : memref<4xf32, #tpu.memory_space<smem>>
    %c2 = arith.constant 2 : index
    %9 = memref.load %arg1[%c2] : memref<4xf32, #tpu.memory_space<smem>>
    %c3 = arith.constant 3 : index
    %10 = memref.load %arg1[%c3] : memref<4xf32, #tpu.memory_space<smem>>
    %11 = vector.extract_strided_slice %6 {offsets = [0, 0], sizes = [1, 2], strides = [1, 1]} : vector<4x2xf32> to vector<1x2xf32>
    %12 = vector.broadcast %7 : f32 to vector<1x2xf32>
    %13 = arith.mulf %11, %12 : vector<1x2xf32>
    %14 = vector.broadcast %8 : f32 to vector<1x2xf32>
    %15 = arith.addf %13, %14 : vector<1x2xf32>
    %16 = vector.extract_strided_slice %6 {offsets = [1, 0], sizes = [1, 2], strides = [1, 1]} : vector<4x2xf32> to vector<1x2xf32>
    %17 = vector.broadcast %9 : f32 to vector<1x2xf32>
    %18 = arith.mulf %16, %17 : vector<1x2xf32>
    %19 = vector.broadcast %10 : f32 to vector<1x2xf32>
    %20 = arith.addf %18, %19 : vector<1x2xf32>
    %21 = vector.extract_strided_slice %6 {offsets = [2, 0], sizes = [2, 2], strides = [1, 1]} : vector<4x2xf32> to vector<2x2xf32>
    %22 = arith.mulf %21, %21 : vector<2x2xf32>
    %cst_6 = arith.constant dense<0.000000e+00> : vector<2xf32>
    %23 = vector.multi_reduction <add>, %22, %cst_6 [0] : vector<2x2xf32> to vector<2xf32>
    %24 = vector.shape_cast %23 : vector<2xf32> to vector<1x2xf32>
    %cst_7 = arith.constant 1.000000e+00 : f32
    %25 = vector.broadcast %cst_7 : f32 to vector<1x2xf32>
    %26 = arith.addf %24, %25 : vector<1x2xf32>
    %27 = math.rsqrt %26 : vector<1x2xf32>
    %28 = vector.broadcast %27 : vector<1x2xf32> to vector<2x2xf32>
    %29 = arith.mulf %21, %28 : vector<2x2xf32>
    %30 = tpu.concatenate %15, %20, %29, %27 in 0 : vector<1x2xf32>, vector<1x2xf32>, vector<2x2xf32>, vector<1x2xf32> -> vector<5x2xf32>
    %c0_8 = arith.constant 0 : index
    %c0_9 = arith.constant 0 : index
    %c0_10 = arith.constant 0 : index
    %31 = vector.load %arg5[%c0_8, %c0_9, %c0_10] : memref<2x5x2xf32, #tpu.memory_space<vmem>>, vector<1x5x2xf32>
    %32 = vector.shape_cast %31 : vector<1x5x2xf32> to vector<5x2xf32>
    %33 = vector.shape_cast %30 : vector<5x2xf32> to vector<1x5x2xf32>
    tpu.vector_store %arg5[%c0_8, %c0_9, %c0_10], %33 {strides = array<i32>} : memref<2x5x2xf32, #tpu.memory_space<vmem>>, vector<1x5x2xf32>,
    %c1_11 = arith.constant 1 : index
    %c0_12 = arith.constant 0 : index
    %c0_13 = arith.constant 0 : index
    %34 = vector.load %arg5[%c1_11, %c0_12, %c0_13] : memref<2x5x2xf32, #tpu.memory_space<vmem>>, vector<1x5x2xf32>
    %35 = vector.shape_cast %34 : vector<1x5x2xf32> to vector<5x2xf32>
    %36 = vector.shape_cast %30 : vector<5x2xf32> to vector<1x5x2xf32>
    tpu.vector_store %arg5[%c1_11, %c0_12, %c0_13], %36 {strides = array<i32>} : memref<2x5x2xf32, #tpu.memory_space<vmem>>, vector<1x5x2xf32>,
    return
  }
  func.func @transform_0(%arg0: i32) -> i32 {
    %c0_i32 = arith.constant 0 : i32
    %c0_i32_0 = arith.constant 0 : i32
    return %c0_i32 : i32
  }
  func.func @transform_1(%arg0: i32) -> (i32, i32) {
    %c0_i32 = arith.constant 0 : i32
    %c0_i32_0 = arith.constant 0 : i32
    return %arg0, %c0_i32 : i32, i32
  }
  func.func @transform_2(%arg0: i32) -> (i32, i32) {
    %c0_i32 = arith.constant 0 : i32
    %c0_i32_0 = arith.constant 0 : i32
    %c0_i32_1 = arith.constant 0 : i32
    return %c0_i32, %c0_i32_0 : i32, i32
  }
  func.func @transform_3(%arg0: i32) -> (i32, i32) {
    %c0_i32 = arith.constant 0 : i32
    %c0_i32_0 = arith.constant 0 : i32
    %c0_i32_1 = arith.constant 0 : i32
    return %c0_i32, %c0_i32_0 : i32, i32
  }
  func.func @transform_4(%arg0: i32) -> (i32, i32, i32) {
    %c0_i32 = arith.constant 0 : i32
    %c0_i32_0 = arith.constant 0 : i32
    %c0_i32_1 = arith.constant 0 : i32
    return %c0_i32, %c0_i32_0, %arg0 : i32, i32, i32
  }
}

</mosaic_0001>

<llo_original>
// kernel: tpu_custom_call.1
$region0: #{tpu_custom_call.1}
  #allocation0 [shape = 'u32[]', space=smem, size = 0x4, offset = 0x4, fixed_abs, tag = 'smem constant byte address 0x4 - core index']
  #allocation1 [shape = 'u32[144,128]{1,0:T(1,128)}', space=vmem, size = 0x12000, scoped, tag = 'internal scratch']
  %s0 = inlined_call_operand.vmem [shape: f32[4], index: 0, kind: input, shape index: {}]
  %s1 = inlined_call_operand.vmem [shape: f32[2,32], index: 1, kind: input, shape index: {}]
  %s2 = inlined_call_operand.vmem [shape: f32[4,32], index: 2, kind: input, shape index: {}]
  %s3 = inlined_call_operand.vmem [shape: f32[4,1], index: 3, kind: input, shape index: {}]
  %s4 = inlined_call_operand.vmem [shape: f32[2,5,2], index: 4, kind: output, shape index: {}]
  %s5 = sld [smem:[#allocation0]]
  $region30: #{tpu_custom_call.1} parent=0
    _
  %s7 = ssub.s32 1, %s5
  %s8 = scalar_select 0, %s7, %s5
  $region1: #{tpu_custom_call.1} parent=0
    #allocation2 [shape = 'u8[512]{0}', space=smem, size = 0x200, scoped, tag = 'input window, operand 0, single buffered']
    #allocation3 [shape = 's32[1]{0}', space=sflag, size = 0x4, scoped, tag = 'scoped memory for tpu_custom_call.1']
    %9 = vsyncpa [#allocation3], 0
    // Predicated region
    $region2: #{tpu_custom_call.1} parent=1 // pred_check
      _
    $region3: #{tpu_custom_call.1} parent=1 // pred_check_branch
      %11 = sbr.rel (0) target = $region5
    $region4: #{tpu_custom_call.1} parent=1 // pred_region
      %s13 = ssub.s32 16, 16
      %14 = vsyncadd [#allocation3], %s13
      %s16 = sshll.u32 %s0, 4
      %s17 = int_to_ptr.vmem [resolvable:$true] %s16
      %19 = dma.vmem_to_smem %s17, 16, [#allocation2], [#allocation3]
    $region5: #{tpu_custom_call.1} parent=1 // pred_fallthru
      _
    // Predicated region
    $region6: #{tpu_custom_call.1} parent=1 // pred_check
      _
    $region7: #{tpu_custom_call.1} parent=1 // pred_check_branch
      %21 = sbr.rel (0) target = $region9
    $region8: #{tpu_custom_call.1} parent=1 // pred_region
      _
    $region9: #{tpu_custom_call.1} parent=1 // pred_fallthru
      _
    // Predicated region
    $region10: #{tpu_custom_call.1} parent=1 // pred_check
      _
    $region11: #{tpu_custom_call.1} parent=1 // pred_check_branch
      %23 = sbr.rel (0) target = $region13
    $region12: #{tpu_custom_call.1} parent=1 // pred_region
      _
    $region13: #{tpu_custom_call.1} parent=1 // pred_fallthru
      _
    // Predicated region
    $region14: #{tpu_custom_call.1} parent=1 // pred_check
      _
    $region15: #{tpu_custom_call.1} parent=1 // pred_check_branch
      %25 = sbr.rel (0) target = $region17
    $region16: #{tpu_custom_call.1} parent=1 // pred_region
      _
    $region17: #{tpu_custom_call.1} parent=1 // pred_fallthru
      _
    // Predicated region
    $region18: #{tpu_custom_call.1} parent=1 // pred_check
      _
    $region19: #{tpu_custom_call.1} parent=1 // pred_check_branch
      %27 = sbr.rel (0) target = $region21
    $region20: #{tpu_custom_call.1} parent=1 // pred_region
      %28 = dma.done [#allocation3], 16
    $region21: #{tpu_custom_call.1} parent=1 // pred_fallthru
      _
    %29 = sfence
    %v30 = vld [vmem:[%s2] sm:$0xf]
    %v31 = vld [vmem:[%s1] sm:$0x3]
    %v32 = vld [vmem:[%s3] sm:$0xf]
    %34 = vset.pattern.permute.xlu0 0
    %35 = vperm.xlu0 %34, %v32
    %v36 = vpop.permute.xlu0 %35
    %vm38 = vcmask 261120
    %v40 = vsel %vm38, %v30, 0
    %v43 = vsel %vm38, %v31, 0
    %45 = vmatprep.subr.mxu0 0.0
    %46 = vmatpush1.xpose.msra.mxu0 %v43
    %47 = vmatprep.subr.mxu0 0.0
    %48 = vmatpush1.xpose.msra.mxu0 0.0
    %49 = vmatprep.subr.mxu0 0.0
    %50 = vmatpush1.xpose.msra.mxu0 0.0
    %51 = vmatprep.subr.mxu0 0.0
    %52 = vmatpush1.xpose.msra.mxu0 0.0
    %53 = vmatprep.subr.mxu0 0.0
    %54 = vmatpush1.xpose.msra.mxu0 0.0
    %55 = vmatprep.subr.mxu0 0.0
    %56 = vmatpush1.xpose.msra.mxu0 0.0
    %57 = vmatprep.subr.mxu0 0.0
    %58 = vmatpush1.xpose.msra.mxu0 0.0
    %59 = vmatprep.subr.mxu0 0.0
    %60 = vmatpush1.xpose.msra.mxu0 0.0
    %61 = vmatprep.subr.mxu0 0.0
    %62 = vmatpush1.xpose.msra.mxu0 0.0
    %63 = vmatprep.subr.mxu0 0.0
    %64 = vmatpush1.xpose.msra.mxu0 0.0
    %65 = vmatprep.subr.mxu0 0.0
    %66 = vmatpush1.xpose.msra.mxu0 0.0
    %67 = vmatprep.subr.mxu0 0.0
    %68 = vmatpush1.xpose.msra.mxu0 0.0
    %69 = vmatprep.subr.mxu0 0.0
    %70 = vmatpush1.xpose.msra.mxu0 0.0
    %71 = vmatprep.subr.mxu0 0.0
    %72 = vmatpush1.xpose.msra.mxu0 0.0
    %73 = vmatprep.subr.mxu0 0.0
    %74 = vmatpush1.xpose.msra.mxu0 0.0
    %75 = vmatprep.subr.mxu0 0.0
    %76 = vmatpush1.xpose.msra.mxu0 0.0
    %77 = vmatprep.subr.mxu0 0.0
    %78 = vmatpush1.xpose.msra.mxu0 0.0
    %79 = vmatprep.subr.mxu0 0.0
    %80 = vmatpush1.xpose.msra.mxu0 0.0
    %81 = vmatprep.subr.mxu0 0.0
    %82 = vmatpush1.xpose.msra.mxu0 0.0
    %83 = vmatprep.subr.mxu0 0.0
    %84 = vmatpush1.xpose.msra.mxu0 0.0
    %85 = vmatprep.subr.mxu0 0.0
    %86 = vmatpush1.xpose.msra.mxu0 0.0
    %87 = vmatprep.subr.mxu0 0.0
    %88 = vmatpush1.xpose.msra.mxu0 0.0
    %89 = vmatprep.subr.mxu0 0.0
    %90 = vmatpush1.xpose.msra.mxu0 0.0
    %91 = vmatprep.subr.mxu0 0.0
    %92 = vmatpush1.xpose.msra.mxu0 0.0
    %93 = vmatprep.subr.mxu0 0.0
    %94 = vmatpush1.xpose.msra.mxu0 0.0
    %95 = vmatprep.subr.mxu0 0.0
    %96 = vmatpush1.xpose.msra.mxu0 0.0
    %97 = vmatprep.subr.mxu0 0.0
    %98 = vmatpush1.xpose.msra.mxu0 0.0
    %99 = vmatprep.subr.mxu0 0.0
    %100 = vmatpush1.xpose.msra.mxu0 0.0
    %101 = vmatprep.subr.mxu0 0.0
    %102 = vmatpush1.xpose.msra.mxu0 0.0
    %103 = vmatprep.subr.mxu0 0.0
    %104 = vmatpush1.xpose.msra.mxu0 0.0
    %105 = vmatprep.subr.mxu0 0.0
    %106 = vmatpush1.xpose.msra.mxu0 0.0
    %107 = vmatprep.subr.mxu0 0.0
    %108 = vmatpush1.xpose.msra.mxu0 0.0
    %109 = vmatprep.mubr.f32.mxu0 0.0
    %110 = vmatmul.mubr.f32.gmra.mrb[0].mxu0 %v40
    %v111 = vpop.f32.mrb[0].mxu0
    %v112 = vadd.f32 %v36, %v111
    %v113 = vpop.f32.mrb[0].mxu0
    %114 = vdwg.mxu0
    %v115 = vtanh.pop %v112
    %s116 = sld [smem:[#allocation2]]
    %s117 = sld [smem:[#allocation2 + $0x1]]
    %s118 = sld [smem:[#allocation2 + $0x2]]
    %s119 = sld [smem:[#allocation2 + $0x3]]
    %v120 = vstv %s116
    %v121 = vmul.f32 %v115, %v120
    %v122 = vstv %s117
    %v123 = vadd.f32 %v121, %v122
    %v124 = vstv %s118
    %v125 = vmul.f32 %v115, %v124
    %v126 = vstv %s119
    %v127 = vadd.f32 %v125, %v126
    %v128 = vmul.f32 %v115, %v115
    %v130 = vrot.slane %v128, 2
    %vm132 = vcmask 9216
    %v133 = vsel %vm132, %v130, 0.0
    %v134 = vrot.slane %v133, 4
    %v135 = vadd.f32 %v133, %v134
    %v136 = vrot.slane %v135, 2
    %v137 = vadd.f32 %v135, %v136
    %v138 = vrot.slane %v137, 1
    %v139 = vadd.f32 %v137, %v138
    %v140 = vadd.f32 %v139, 1.0
    %v141 = vrsqrt.pop %v140
    %v142 = vmul.f32 %v115, %v141
    %vm143 = vcmask 1040384
    %v144 = vsel %vm143, %v123, %v127
    %vm145 = vcmask 1041408
    %v146 = vsel %vm145, %v144, %v142
    %vm147 = vcmask 1043456
    %v148 = vsel %vm147, %v146, %v141
    %vm149 = vcmask 12288
    %150 = vst.msk [vmem:[%s4] sm:$0x1f] %vm149, %v148
    %s151 = scalar_lea.vmem %s4, 8
    %152 = vst.msk [vmem:[%s151] sm:$0x1f] %vm149, %v148
    // Predicated region
    $region22: #{tpu_custom_call.1} parent=1 // pred_check
      _
    $region23: #{tpu_custom_call.1} parent=1 // pred_check_branch
      %154 = sbr.rel (0) target = $region25
    $region24: #{tpu_custom_call.1} parent=1 // pred_region
      _
    $region25: #{tpu_custom_call.1} parent=1 // pred_fallthru
      _
    // Predicated region
    $region26: #{tpu_custom_call.1} parent=1 // pred_check
      _
    $region27: #{tpu_custom_call.1} parent=1 // pred_check_branch
      %156 = sbr.rel (0) target = $region29
    $region28: #{tpu_custom_call.1} parent=1 // pred_region
      _
    $region29: #{tpu_custom_call.1} parent=1 // pred_fallthru
      _
    %157 = vsyncpa [#allocation3], 1

</llo_original>
